<compile_context>
chip_gen: v6e
topology: v6e:2x2x1
jax: 0.10.0
libtpu: 0.0.40
codegen_flags: <defaults>
</compile_context>

<pallas_src>
import jax
import jax.numpy as jnp
from jax import lax
from jax.experimental import pallas as pl
from jax.experimental.pallas import tpu as pltpu


def _round_up(x, m):
    return ((x + m - 1) // m) * m


def mlp_kernel(x_ref, w1_ref, b1_ref, w2_ref, b2_ref, w3_ref, o_ref):
    # Contract x's feature axis (1) with the weight's 'in' axis (1):
    # (TB, Din) x (H, Din) -> (TB, H).  Equivalent to x @ W.T with no
    # host-side transpose.
    cd = (((1,), (1,)), ((), ()))

    def swish(h_f32):
        # z * sigmoid(z) = z / (1 + exp(-z)); exp + approx reciprocal -> EUP slot.
        return h_f32 * pl.reciprocal(1.0 + jnp.exp(-h_f32), approx=True)

    x = x_ref[...]  # bf16 (TB, Dp)

    h = lax.dot_general(x, w1_ref[...], cd, preferred_element_type=jnp.float32)
    h = swish(h + b1_ref[...])                       # f32 bias-add + swish

    h = lax.dot_general(h.astype(jnp.bfloat16), w2_ref[...], cd,
                        preferred_element_type=jnp.float32)
    h = swish(h + b2_ref[...])

    out = lax.dot_general(h.astype(jnp.bfloat16), w3_ref[...], cd,
                          preferred_element_type=jnp.float32)
    o_ref[...] = out.astype(o_ref.dtype)


def mlp_forward(x, w1, b1, w2, b2, w3, *, block_b=256):
    """x: (B, D_in) f32; w*: PyTorch layout (out, in); b*: (out,)."""
    B, D_in = x.shape
    H = w1.shape[0]
    D_out = w3.shape[0]

    LANE = 128
    Dp = _round_up(D_in, LANE)       # lane-dense input features
    Hp = _round_up(H, LANE)          # lane-dense hidden
    Op = _round_up(D_out, LANE)      # lane-dense output (unmasked vst)

    # Batch tiling: big batches are tiled at block_b rows (>=256 keeps the
    # 256x256 MXU on v6e/v7x full); small batches become one 8-aligned tile.
    if B > block_b:
        TB = block_b
    else:
        TB = _round_up(max(B, 8), 8)
    Bp = _round_up(B, TB)

    bf16, f32 = jnp.bfloat16, jnp.float32

    # Zero-pad operands.
    xp = jnp.zeros((Bp, Dp), bf16).at[:B, :D_in].set(x.astype(bf16))
    w1p = jnp.zeros((Hp, Dp), bf16).at[:H, :D_in].set(w1.astype(bf16))
    w2p = jnp.zeros((Hp, Hp), bf16).at[:H, :H].set(w2.astype(bf16))
    w3p = jnp.zeros((Op, Hp), bf16).at[:D_out, :H].set(w3.astype(bf16))
    b1p = jnp.zeros((1, Hp), f32).at[0, :H].set(b1.astype(f32))
    b2p = jnp.zeros((1, Hp), f32).at[0, :H].set(b2.astype(f32))

    grid = (pl.cdiv(Bp, TB),)

    # Advisory cost hint for XLA's scheduler around the custom call.
    flops = 2 * Bp * (Dp * Hp + Hp * Hp + Hp * Op)
    transcendentals = 2 * Bp * Hp                       # one exp per swish elem
    bytes_accessed = (xp.size + w1p.size + w2p.size + w3p.size) * 2 \
        + (b1p.size + b2p.size) * 4 + Bp * Op * 4

    out_pad = pl.pallas_call(
        mlp_kernel,
        out_shape=jax.ShapeDtypeStruct((Bp, Op), f32),
        grid_spec=pltpu.PrefetchScalarGridSpec(
            num_scalar_prefetch=0,
            grid=grid,
            in_specs=[
                pl.BlockSpec((TB, Dp), lambda i: (i, 0)),   # x tile (pipelined)
                pl.BlockSpec((Hp, Dp), lambda i: (0, 0)),   # W1 (VMEM-resident)
                pl.BlockSpec((1, Hp), lambda i: (0, 0)),    # b1
                pl.BlockSpec((Hp, Hp), lambda i: (0, 0)),   # W2
                pl.BlockSpec((1, Hp), lambda i: (0, 0)),    # b2
                pl.BlockSpec((Op, Hp), lambda i: (0, 0)),   # W3
            ],
            out_specs=pl.BlockSpec((TB, Op), lambda i: (i, 0)),
        ),
        compiler_params=pltpu.CompilerParams(
            # Batch tiles are independent -> megacore-shard on v7x (free elsewhere).
            dimension_semantics=("parallel",)),
        cost_estimate=pl.CostEstimate(flops=flops,
                                      transcendentals=transcendentals,
                                      bytes_accessed=bytes_accessed),
        # TODO(synk): for very large hidden_dim the resident-weight design needs
        # a K-tiled grid axis + pl.when-initialized accumulator and an explicit
        # vmem_limit_bytes budget (64 MiB on v7x); unnecessary at these sizes.
    )(xp, w1p, b1p, w2p, b2p, w3p)

    return out_pad[:B, :D_out].astype(x.dtype)


def orthogonal(key, shape, dtype=jnp.float32):
    """Deterministic orthogonal init matching torch.nn.init.orthogonal_ semantics
    (rows of the (out, in) weight matrix are orthonormal when out <= in)."""
    rows, cols = shape
    n, m = (rows, cols) if rows >= cols else (cols, rows)
    a = jax.random.normal(key, (n, m), dtype=jnp.float32)
    q, r = jnp.linalg.qr(a)
    q = q * jnp.sign(jnp.diag(r))[None, :]
    if rows < cols:
        q = q.T
    return q.astype(dtype)


if __name__ == "__main__":
    input_dim, hidden_dim, output_dim = 16, 32, 8
    batch = 4

    key = jax.random.PRNGKey(0)
    kx, k1, k2, k3, kb1, kb2 = jax.random.split(key, 6)

    x = jax.random.normal(kx, (batch, input_dim), dtype=jnp.float32)

    # PyTorch Linear weight layout: (out_features, in_features)
    w1 = orthogonal(k1, (hidden_dim, input_dim))
    w2 = orthogonal(k2, (hidden_dim, hidden_dim))
    w3 = orthogonal(k3, (output_dim, hidden_dim))
    b1 = 0.01 * jax.random.normal(kb1, (hidden_dim,), dtype=jnp.float32)
    b2 = 0.01 * jax.random.normal(kb2, (hidden_dim,), dtype=jnp.float32)

    out = mlp_forward(x, w1, b1, w2, b2, w3)
    out = jax.block_until_ready(out)
    assert out.shape == (batch, output_dim)

    # Reference 1: mirrors the kernel's numerics (bf16 matmul operands, f32 accum).
    def swish(z):
        return z * jax.nn.sigmoid(z)

    bf16 = jnp.bfloat16
    h = swish(jnp.dot(x.astype(bf16), w1.astype(bf16).T,
                      preferred_element_type=jnp.float32) + b1)
    h = swish(jnp.dot(h.astype(bf16), w2.astype(bf16).T,
                      preferred_element_type=jnp.float32) + b2)
    ref_bf16 = jnp.dot(h.astype(bf16), w3.astype(bf16).T,
                       preferred_element_type=jnp.float32)
    assert jnp.allclose(out, ref_bf16, atol=1e-2, rtol=1e-2)

    # Reference 2: pure-f32 semantics sanity check (looser: bf16 quantization).
    h = swish(x @ w1.T + b1)
    h = swish(h @ w2.T + b2)
    ref_f32 = h @ w3.T
    assert jnp.allclose(out, ref_f32, atol=1e-1, rtol=1e-1)

    print("KERNEL_OK")
</pallas_src>

<mosaic_0001>
module attributes {stable_mosaic.version = 11 : i64} {
  func.func @mlp_kernel(%arg0: i32, %arg1: memref<8x128xbf16, #tpu.memory_space<vmem>>, %arg2: memref<128x128xbf16, #tpu.memory_space<vmem>>, %arg3: memref<1x128xf32, #tpu.memory_space<vmem>>, %arg4: memref<128x128xbf16, #tpu.memory_space<vmem>>, %arg5: memref<1x128xf32, #tpu.memory_space<vmem>>, %arg6: memref<128x128xbf16, #tpu.memory_space<vmem>>, %arg7: memref<8x128xf32, #tpu.memory_space<vmem>>) attributes {dimension_semantics = [#tpu.dimension_semantics<parallel>], iteration_bounds = array<i64: 1>, scalar_prefetch = 0 : i64, scratch_operands = 0 : i64, tpu.core_type = #tpu.core_type<tc>, window_params = [{transform_indices = @transform_0, window_bounds = array<i64: 8, 128>}, {pipeline_mode = #tpu.pipeline_mode<synchronous>, transform_indices = @transform_1, window_bounds = array<i64: 128, 128>}, {pipeline_mode = #tpu.pipeline_mode<synchronous>, transform_indices = @transform_2, window_bounds = array<i64: 1, 128>}, {pipeline_mode = #tpu.pipeline_mode<synchronous>, transform_indices = @transform_3, window_bounds = array<i64: 128, 128>}, {pipeline_mode = #tpu.pipeline_mode<synchronous>, transform_indices = @transform_4, window_bounds = array<i64: 1, 128>}, {pipeline_mode = #tpu.pipeline_mode<synchronous>, transform_indices = @transform_5, window_bounds = array<i64: 128, 128>}, {transform_indices = @transform_6, window_bounds = array<i64: 8, 128>}]} {
    %c0 = arith.constant 0 : index
    %c0_0 = arith.constant 0 : index
    %0 = vector.load %arg1[%c0, %c0_0] : memref<8x128xbf16, #tpu.memory_space<vmem>>, vector<8x128xbf16>
    %c0_1 = arith.constant 0 : index
    %c0_2 = arith.constant 0 : index
    %1 = vector.load %arg2[%c0_1, %c0_2] : memref<128x128xbf16, #tpu.memory_space<vmem>>, vector<128x128xbf16>
    %cst = arith.constant dense<0.000000e+00> : vector<8x128xf32>
    %2 = tpu.matmul %0, %1, %cst {dimension_numbers = #tpu.dot_dimension_numbers<[1], [1], [0], [0], [0, 0, 1, 0], [], []>} : vector<8x128xbf16>, vector<128x128xbf16>, vector<8x128xf32> -> vector<8x128xf32>
    %c0_3 = arith.constant 0 : index
    %c0_4 = arith.constant 0 : index
    %3 = vector.load %arg3[%c0_3, %c0_4] : memref<1x128xf32, #tpu.memory_space<vmem>>, vector<1x128xf32>
    %4 = vector.broadcast %3 : vector<1x128xf32> to vector<8x128xf32>
    %5 = arith.addf %2, %4 : vector<8x128xf32>
    %cst_5 = arith.constant 0.000000e+00 : f32
    %6 = vector.broadcast %cst_5 : f32 to vector<8x128xf32>
    %7 = arith.subf %6, %5 : vector<8x128xf32>
    %8 = math.exp %7 : vector<8x128xf32>
    %cst_6 = arith.constant 1.000000e+00 : f32
    %9 = vector.broadcast %cst_6 : f32 to vector<8x128xf32>
    %10 = arith.addf %9, %8 : vector<8x128xf32>
    %11 = tpu.reciprocal %10 {approx = true} : vector<8x128xf32> -> vector<8x128xf32>
    %12 = arith.mulf %5, %11 : vector<8x128xf32>
    %13 = arith.truncf %12 : vector<8x128xf32> to vector<8x128xbf16>
    %c0_7 = arith.constant 0 : index
    %c0_8 = arith.constant 0 : index
    %14 = vector.load %arg4[%c0_7, %c0_8] : memref<128x128xbf16, #tpu.memory_space<vmem>>, vector<128x128xbf16>
    %cst_9 = arith.constant dense<0.000000e+00> : vector<8x128xf32>
    %15 = tpu.matmul %13, %14, %cst_9 {dimension_numbers = #tpu.dot_dimension_numbers<[1], [1], [0], [0], [0, 0, 1, 0], [], []>} : vector<8x128xbf16>, vector<128x128xbf16>, vector<8x128xf32> -> vector<8x128xf32>
    %c0_10 = arith.constant 0 : index
    %c0_11 = arith.constant 0 : index
    %16 = vector.load %arg5[%c0_10, %c0_11] : memref<1x128xf32, #tpu.memory_space<vmem>>, vector<1x128xf32>
    %17 = vector.broadcast %16 : vector<1x128xf32> to vector<8x128xf32>
    %18 = arith.addf %15, %17 : vector<8x128xf32>
    %cst_12 = arith.constant 0.000000e+00 : f32
    %19 = vector.broadcast %cst_12 : f32 to vector<8x128xf32>
    %20 = arith.subf %19, %18 : vector<8x128xf32>
    %21 = math.exp %20 : vector<8x128xf32>
    %cst_13 = arith.constant 1.000000e+00 : f32
    %22 = vector.broadcast %cst_13 : f32 to vector<8x128xf32>
    %23 = arith.addf %22, %21 : vector<8x128xf32>
    %24 = tpu.reciprocal %23 {approx = true} : vector<8x128xf32> -> vector<8x128xf32>
    %25 = arith.mulf %18, %24 : vector<8x128xf32>
    %26 = arith.truncf %25 : vector<8x128xf32> to vector<8x128xbf16>
    %c0_14 = arith.constant 0 : index
    %c0_15 = arith.constant 0 : index
    %27 = vector.load %arg6[%c0_14, %c0_15] : memref<128x128xbf16, #tpu.memory_space<vmem>>, vector<128x128xbf16>
    %cst_16 = arith.constant dense<0.000000e+00> : vector<8x128xf32>
    %28 = tpu.matmul %26, %27, %cst_16 {dimension_numbers = #tpu.dot_dimension_numbers<[1], [1], [0], [0], [0, 0, 1, 0], [], []>} : vector<8x128xbf16>, vector<128x128xbf16>, vector<8x128xf32> -> vector<8x128xf32>
    %c0_17 = arith.constant 0 : index
    %c0_18 = arith.constant 0 : index
    %29 = vector.load %arg7[%c0_17, %c0_18] : memref<8x128xf32, #tpu.memory_space<vmem>>, vector<8x128xf32>
    tpu.vector_store %arg7[%c0_17, %c0_18], %28 {strides = array<i32>} : memref<8x128xf32, #tpu.memory_space<vmem>>, vector<8x128xf32>,
    return
  }
  func.func @transform_0(%arg0: i32) -> (i32, i32) {
    %c0_i32 = arith.constant 0 : i32
    %c0_i32_0 = arith.constant 0 : i32
    return %arg0, %c0_i32 : i32, i32
  }
  func.func @transform_1(%arg0: i32) -> (i32, i32) {
    %c0_i32 = arith.constant 0 : i32
    %c0_i32_0 = arith.constant 0 : i32
    %c0_i32_1 = arith.constant 0 : i32
    return %c0_i32, %c0_i32_0 : i32, i32
  }
  func.func @transform_2(%arg0: i32) -> (i32, i32) {
    %c0_i32 = arith.constant 0 : i32
    %c0_i32_0 = arith.constant 0 : i32
    %c0_i32_1 = arith.constant 0 : i32
    return %c0_i32, %c0_i32_0 : i32, i32
  }
  func.func @transform_3(%arg0: i32) -> (i32, i32) {
    %c0_i32 = arith.constant 0 : i32
    %c0_i32_0 = arith.constant 0 : i32
    %c0_i32_1 = arith.constant 0 : i32
    return %c0_i32, %c0_i32_0 : i32, i32
  }
  func.func @transform_4(%arg0: i32) -> (i32, i32) {
    %c0_i32 = arith.constant 0 : i32
    %c0_i32_0 = arith.constant 0 : i32
    %c0_i32_1 = arith.constant 0 : i32
    return %c0_i32, %c0_i32_0 : i32, i32
  }
  func.func @transform_5(%arg0: i32) -> (i32, i32) {
    %c0_i32 = arith.constant 0 : i32
    %c0_i32_0 = arith.constant 0 : i32
    %c0_i32_1 = arith.constant 0 : i32
    return %c0_i32, %c0_i32_0 : i32, i32
  }
  func.func @transform_6(%arg0: i32) -> (i32, i32) {
    %c0_i32 = arith.constant 0 : i32
    %c0_i32_0 = arith.constant 0 : i32
    return %arg0, %c0_i32 : i32, i32
  }
}

</mosaic_0001>

<llo_original>
// kernel: tpu_custom_call.1
$region0: #{tpu_custom_call.1}
  #allocation0 [shape = 'u32[]', space=smem, size = 0x4, offset = 0x4, fixed_abs, tag = 'smem constant byte address 0x4 - core index']
  #allocation1 [shape = 'u32[144,128]{1,0:T(1,128)}', space=vmem, size = 0x12000, scoped, tag = 'internal scratch']
  %s0 = inlined_call_operand.hbm [shape: bf16[8,128], index: 0, kind: input, shape index: {}]
  %s1 = inlined_call_operand.hbm [shape: bf16[128,128], index: 1, kind: input, shape index: {}]
  %s2 = inlined_call_operand.vmem [shape: f32[1,128], index: 2, kind: input, shape index: {}]
  %s3 = inlined_call_operand.hbm [shape: bf16[128,128], index: 3, kind: input, shape index: {}]
  %s4 = inlined_call_operand.vmem [shape: f32[1,128], index: 4, kind: input, shape index: {}]
  %s5 = inlined_call_operand.hbm [shape: bf16[128,128], index: 5, kind: input, shape index: {}]
  %s6 = inlined_call_operand.hbm [shape: f32[8,128], index: 6, kind: output, shape index: {}]
  %s7 = sld [smem:[#allocation0]]
  $region50: #{tpu_custom_call.1} parent=0
    _
  %s9 = ssub.s32 1, %s7
  %s10 = scalar_select 0, %s9, %s7
  $region1: #{tpu_custom_call.1} parent=0
    #allocation2 [shape = 'u8[2048]{0}', space=vmem, size = 0x800, scoped, tag = 'input window, operand 0, single buffered']
    #allocation3 [shape = 's32[1]{0}', space=sflag, size = 0x4, scoped, tag = 'scoped memory for tpu_custom_call.1']
    #allocation4 [shape = 's32[1]{0}', space=sflag, size = 0x4, scoped, tag = 'scoped memory for tpu_custom_call.1']
    #allocation5 [shape = 'u8[32768]{0}', space=vmem, size = 0x8000, scoped, tag = 'input window, operand 1, single buffered']
    #allocation6 [shape = 's32[1]{0}', space=sflag, size = 0x4, scoped, tag = 'scoped memory for tpu_custom_call.1']
    #allocation7 [shape = 'u8[32768]{0}', space=vmem, size = 0x8000, scoped, tag = 'input window, operand 3, single buffered']
    #allocation8 [shape = 'u8[32768]{0}', space=vmem, size = 0x8000, scoped, tag = 'input window, operand 5, single buffered']
    #allocation9 [shape = 's32[1]{0}', space=sflag, size = 0x4, scoped, tag = 'scoped memory for tpu_custom_call.1']
    #allocation10 [shape = 'u8[4096]{0}', space=vmem, size = 0x1000, scoped, tag = 'output window, operand 0, single buffered']
    %11 = vsyncpa [#allocation3], 0
    %12 = vsyncpa [#allocation6], 0
    %13 = vsyncpa [#allocation9], 0
    %14 = vsyncpa [#allocation4], 0
    // Predicated region
    $region2: #{tpu_custom_call.1} parent=1 // pred_check
      _
    $region3: #{tpu_custom_call.1} parent=1 // pred_check_branch
      %16 = sbr.rel (0) target = $region5
    $region4: #{tpu_custom_call.1} parent=1 // pred_region
      %s18 = ssub.s32 64, 64
      %19 = vsyncadd [#allocation3], %s18
      %s21 = sshll.u32 [#allocation2], 4
      %s22 = int_to_ptr.vmem [resolvable:$true] %s21
      %24 = dma.hbm_to_vmem [thread:$0]  %s0, 64, %s22, [#allocation3]
    $region5: #{tpu_custom_call.1} parent=1 // pred_fallthru
      _
    // Predicated region
    $region6: #{tpu_custom_call.1} parent=1 // pred_check
      _
    $region7: #{tpu_custom_call.1} parent=1 // pred_check_branch
      %26 = sbr.rel (0) target = $region9
    $region8: #{tpu_custom_call.1} parent=1 // pred_region
      %s28 = ssub.s32 1024, 1024
      %29 = vsyncadd [#allocation6], %s28
      %s30 = sshll.u32 [#allocation5], 4
      %s31 = int_to_ptr.vmem [resolvable:$true] %s30
      %36 = dma.hbm_to_vmem [thread:$0]  %s1, 1024, %s31, [#allocation6], 64, 64, 4
    $region9: #{tpu_custom_call.1} parent=1 // pred_fallthru
      _
    // Predicated region
    $region10: #{tpu_custom_call.1} parent=1 // pred_check
      _
    $region11: #{tpu_custom_call.1} parent=1 // pred_check_branch
      %38 = sbr.rel (0) target = $region13
    $region12: #{tpu_custom_call.1} parent=1 // pred_region
      _
    $region13: #{tpu_custom_call.1} parent=1 // pred_fallthru
      _
    // Predicated region
    $region14: #{tpu_custom_call.1} parent=1 // pred_check
      _
    $region15: #{tpu_custom_call.1} parent=1 // pred_check_branch
      %40 = sbr.rel (0) target = $region17
    $region16: #{tpu_custom_call.1} parent=1 // pred_region
      %s42 = ssub.s32 1024, 1024
      %43 = vsyncadd [#allocation6], %s42
      %s44 = sshll.u32 [#allocation7], 4
      %s45 = int_to_ptr.vmem [resolvable:$true] %s44
      %50 = dma.hbm_to_vmem [thread:$0]  %s3, 1024, %s45, [#allocation6], 64, 64, 4
    $region17: #{tpu_custom_call.1} parent=1 // pred_fallthru
      _
    // Predicated region
    $region18: #{tpu_custom_call.1} parent=1 // pred_check
      _
    $region19: #{tpu_custom_call.1} parent=1 // pred_check_branch
      %52 = sbr.rel (0) target = $region21
    $region20: #{tpu_custom_call.1} parent=1 // pred_region
      _
    $region21: #{tpu_custom_call.1} parent=1 // pred_fallthru
      _
    // Predicated region
    $region22: #{tpu_custom_call.1} parent=1 // pred_check
      _
    $region23: #{tpu_custom_call.1} parent=1 // pred_check_branch
      %54 = sbr.rel (0) target = $region25
    $region24: #{tpu_custom_call.1} parent=1 // pred_region
      %s56 = ssub.s32 1024, 1024
      %57 = vsyncadd [#allocation9], %s56
      %s58 = sshll.u32 [#allocation8], 4
      %s59 = int_to_ptr.vmem [resolvable:$true] %s58
      %64 = dma.hbm_to_vmem [thread:$0]  %s5, 1024, %s59, [#allocation9], 64, 64, 4
    $region25: #{tpu_custom_call.1} parent=1 // pred_fallthru
      _
    // Predicated region
    $region26: #{tpu_custom_call.1} parent=1 // pred_check
      _
    $region27: #{tpu_custom_call.1} parent=1 // pred_check_branch
      %66 = sbr.rel (0) target = $region29
    $region28: #{tpu_custom_call.1} parent=1 // pred_region
      %67 = dma.done [#allocation3], 64
    $region29: #{tpu_custom_call.1} parent=1 // pred_fallthru
      _
    // Predicated region
    $region30: #{tpu_custom_call.1} parent=1 // pred_check
      _
    $region31: #{tpu_custom_call.1} parent=1 // pred_check_branch
      %69 = sbr.rel (0) target = $region33
    $region32: #{tpu_custom_call.1} parent=1 // pred_region
      %70 = dma.done [#allocation6], 1024
    $region33: #{tpu_custom_call.1} parent=1 // pred_fallthru
      _
    // Predicated region
    $region34: #{tpu_custom_call.1} parent=1 // pred_check
      _
    $region35: #{tpu_custom_call.1} parent=1 // pred_check_branch
      %72 = sbr.rel (0) target = $region37
    $region36: #{tpu_custom_call.1} parent=1 // pred_region
      %73 = dma.done [#allocation6], 1024
    $region37: #{tpu_custom_call.1} parent=1 // pred_fallthru
      _
    // Predicated region
    $region38: #{tpu_custom_call.1} parent=1 // pred_check
      _
    $region39: #{tpu_custom_call.1} parent=1 // pred_check_branch
      %75 = sbr.rel (0) target = $region41
    $region40: #{tpu_custom_call.1} parent=1 // pred_region
      %76 = dma.done [#allocation9], 1024
    $region41: #{tpu_custom_call.1} parent=1 // pred_fallthru
      _
    %v78 = vld [vmem:[#allocation2] sm:$0xf]
    %v79 = vld [vmem:[#allocation5] sm:$0xf]
    %v80 = vld [vmem:[#allocation5 + $0x4] sm:$0xf]
    %v81 = vld [vmem:[#allocation5 + $0x8] sm:$0xf]
    %v82 = vld [vmem:[#allocation5 + $0xc] sm:$0xf]
    %v83 = vld [vmem:[#allocation5 + $0x10] sm:$0xf]
    %v84 = vld [vmem:[#allocation5 + $0x14] sm:$0xf]
    %v85 = vld [vmem:[#allocation5 + $0x18] sm:$0xf]
    %v86 = vld [vmem:[#allocation5 + $0x1c] sm:$0xf]
    %v87 = vld [vmem:[#allocation5 + $0x20] sm:$0xf]
    %v88 = vld [vmem:[#allocation5 + $0x24] sm:$0xf]
    %v89 = vld [vmem:[#allocation5 + $0x28] sm:$0xf]
    %v90 = vld [vmem:[#allocation5 + $0x2c] sm:$0xf]
    %v91 = vld [vmem:[#allocation5 + $0x30] sm:$0xf]
    %v92 = vld [vmem:[#allocation5 + $0x34] sm:$0xf]
    %v93 = vld [vmem:[#allocation5 + $0x38] sm:$0xf]
    %v94 = vld [vmem:[#allocation5 + $0x3c] sm:$0xf]
    %v95 = vld [vmem:[%s2] sm:$0x1]
    %v97 = vlaneseq
    %v98 = vshrl.u32 %v97, 7
    %v99 = vsub.s32 0, %v98
    %v100 = vrot.slane %v95, %v99
    %v118 = vunpack.c.l.b16 %v79
    %v119 = vunpack.c.l.b16 %v80
    %v120 = vunpack.c.l.b16 %v81
    %v121 = vunpack.c.l.b16 %v82
    %v122 = vunpack.c.l.b16 %v83
    %v123 = vunpack.c.l.b16 %v84
    %v124 = vunpack.c.l.b16 %v85
    %v125 = vunpack.c.l.b16 %v86
    %v126 = vunpack.c.l.b16 %v87
    %v127 = vunpack.c.l.b16 %v88
    %v128 = vunpack.c.l.b16 %v89
    %v129 = vunpack.c.l.b16 %v90
    %v130 = vunpack.c.l.b16 %v91
    %v131 = vunpack.c.l.b16 %v92
    %v132 = vunpack.c.l.b16 %v93
    %v133 = vunpack.c.l.b16 %v94
    %v134 = vpack.c.b16 %v119, %v118
    %v135 = vpack.c.b16 %v121, %v120
    %v136 = vpack.c.b16 %v123, %v122
    %v137 = vpack.c.b16 %v125, %v124
    %v138 = vpack.c.b16 %v127, %v126
    %v139 = vpack.c.b16 %v129, %v128
    %v140 = vpack.c.b16 %v131, %v130
    %v141 = vpack.c.b16 %v133, %v132
    %150 = vmatprep.subr.bf16.mxu0 0
    %151 = vmatpush1.bf16.xpose.msra.mxu0 %v141
    %152 = vmatprep.subr.bf16.mxu0 0
    %153 = vmatpush1.bf16.xpose.msra.mxu0 %v140
    %154 = vmatprep.subr.bf16.mxu0 0
    %155 = vmatpush1.bf16.xpose.msra.mxu0 %v139
    %156 = vmatprep.subr.bf16.mxu0 0
    %157 = vmatpush1.bf16.xpose.msra.mxu0 %v138
    %158 = vmatprep.subr.bf16.mxu0 0
    %159 = vmatpush1.bf16.xpose.msra.mxu0 %v137
    %160 = vmatprep.subr.bf16.mxu0 0
    %161 = vmatpush1.bf16.xpose.msra.mxu0 %v136
    %162 = vmatprep.subr.bf16.mxu0 0
    %163 = vmatpush1.bf16.xpose.msra.mxu0 %v135
    %164 = vmatprep.subr.bf16.mxu0 0
    %165 = vmatpush1.bf16.xpose.msra.mxu0 %v134
    %166 = vmatprep.subr.bf16.mxu0 0
    %167 = vmatpush2.bf16.xpose.msra.mxu0 0
    %168 = vmatprep.subr.bf16.mxu0 0
    %169 = vmatpush2.bf16.xpose.msra.mxu0 0
    %170 = vmatprep.subr.bf16.mxu0 0
    %171 = vmatpush2.bf16.xpose.msra.mxu0 0
    %172 = vmatprep.subr.bf16.mxu0 0
    %173 = vmatpush2.bf16.xpose.msra.mxu0 0
    %174 = vmatprep.subr.bf16.mxu0 0
    %175 = vmatpush2.bf16.xpose.msra.mxu0 0
    %176 = vmatprep.subr.bf16.mxu0 0
    %177 = vmatpush2.bf16.xpose.msra.mxu0 0
    %178 = vmatprep.subr.bf16.mxu0 0
    %179 = vmatpush2.bf16.xpose.msra.mxu0 0
    %180 = vmatprep.subr.bf16.mxu0 0
    %181 = vmatpush2.bf16.xpose.msra.mxu0 0
    %182 = vmatprep.mubr.bf16.mxu0 0
    %183 = vmatmul.mubr.bf16.gmra.mxu0 %v78
    %v184 = vpop.f32.mrf.mxu0
    %v185 = vadd.f32 %v100, %v184
    %v186 = vpop.f32.mrf.mxu0
    %v187 = vpop.f32.mrf.mxu0
    %v188 = vpop.f32.mrf.mxu0
    %189 = vdwg.mxu0
    %v190 = vsub.f32 0.0, %v185
    %v191 = vmul.f32 %v190, 1.442695
    %v192 = vpow.pop %v191
    %v193 = vadd.f32 %v192, 1.0
    %v194 = vrcp.pop %v193
    %v195 = vmul.f32 %v185, %v194
    %v196 = vpack.c.bf16 %v195, %v195
    %v197 = vld [vmem:[#allocation7] sm:$0xf]
    %v198 = vld [vmem:[#allocation7 + $0x4] sm:$0xf]
    %v199 = vld [vmem:[#allocation7 + $0x8] sm:$0xf]
    %v200 = vld [vmem:[#allocation7 + $0xc] sm:$0xf]
    %v201 = vld [vmem:[#allocation7 + $0x10] sm:$0xf]
    %v202 = vld [vmem:[#allocation7 + $0x14] sm:$0xf]
    %v203 = vld [vmem:[#allocation7 + $0x18] sm:$0xf]
    %v204 = vld [vmem:[#allocation7 + $0x1c] sm:$0xf]
    %v205 = vld [vmem:[#allocation7 + $0x20] sm:$0xf]
    %v206 = vld [vmem:[#allocation7 + $0x24] sm:$0xf]
    %v207 = vld [vmem:[#allocation7 + $0x28] sm:$0xf]
    %v208 = vld [vmem:[#allocation7 + $0x2c] sm:$0xf]
    %v209 = vld [vmem:[#allocation7 + $0x30] sm:$0xf]
    %v210 = vld [vmem:[#allocation7 + $0x34] sm:$0xf]
    %v211 = vld [vmem:[#allocation7 + $0x38] sm:$0xf]
    %v212 = vld [vmem:[#allocation7 + $0x3c] sm:$0xf]
    %v213 = vld [vmem:[%s4] sm:$0x1]
    %v215 = vlaneseq
    %v216 = vshrl.u32 %v215, 7
    %v217 = vsub.s32 0, %v216
    %v218 = vrot.slane %v213, %v217
    %v236 = vunpack.c.l.b16 %v197
    %v237 = vunpack.c.l.b16 %v198
    %v238 = vunpack.c.l.b16 %v199
    %v239 = vunpack.c.l.b16 %v200
    %v240 = vunpack.c.l.b16 %v201
    %v241 = vunpack.c.l.b16 %v202
    %v242 = vunpack.c.l.b16 %v203
    %v243 = vunpack.c.l.b16 %v204
    %v244 = vunpack.c.l.b16 %v205
    %v245 = vunpack.c.l.b16 %v206
    %v246 = vunpack.c.l.b16 %v207
    %v247 = vunpack.c.l.b16 %v208
    %v248 = vunpack.c.l.b16 %v209
    %v249 = vunpack.c.l.b16 %v210
    %v250 = vunpack.c.l.b16 %v211
    %v251 = vunpack.c.l.b16 %v212
    %v252 = vpack.c.b16 %v237, %v236
    %v253 = vpack.c.b16 %v239, %v238
    %v254 = vpack.c.b16 %v241, %v240
    %v255 = vpack.c.b16 %v243, %v242
    %v256 = vpack.c.b16 %v245, %v244
    %v257 = vpack.c.b16 %v247, %v246
    %v258 = vpack.c.b16 %v249, %v248
    %v259 = vpack.c.b16 %v251, %v250
    %268 = vmatprep.subr.bf16.mxu0 0
    %269 = vmatpush1.bf16.xpose.msra.mxu0 %v259
    %270 = vmatprep.subr.bf16.mxu0 0
    %271 = vmatpush1.bf16.xpose.msra.mxu0 %v258
    %272 = vmatprep.subr.bf16.mxu0 0
    %273 = vmatpush1.bf16.xpose.msra.mxu0 %v257
    %274 = vmatprep.subr.bf16.mxu0 0
    %275 = vmatpush1.bf16.xpose.msra.mxu0 %v256
    %276 = vmatprep.subr.bf16.mxu0 0
    %277 = vmatpush1.bf16.xpose.msra.mxu0 %v255
    %278 = vmatprep.subr.bf16.mxu0 0
    %279 = vmatpush1.bf16.xpose.msra.mxu0 %v254
    %280 = vmatprep.subr.bf16.mxu0 0
    %281 = vmatpush1.bf16.xpose.msra.mxu0 %v253
    %282 = vmatprep.subr.bf16.mxu0 0
    %283 = vmatpush1.bf16.xpose.msra.mxu0 %v252
    %284 = vmatprep.subr.bf16.mxu0 0
    %285 = vmatpush2.bf16.xpose.msra.mxu0 0
    %286 = vmatprep.subr.bf16.mxu0 0
    %287 = vmatpush2.bf16.xpose.msra.mxu0 0
    %288 = vmatprep.subr.bf16.mxu0 0
    %289 = vmatpush2.bf16.xpose.msra.mxu0 0
    %290 = vmatprep.subr.bf16.mxu0 0
    %291 = vmatpush2.bf16.xpose.msra.mxu0 0
    %292 = vmatprep.subr.bf16.mxu0 0
    %293 = vmatpush2.bf16.xpose.msra.mxu0 0
    %294 = vmatprep.subr.bf16.mxu0 0
    %295 = vmatpush2.bf16.xpose.msra.mxu0 0
    %296 = vmatprep.subr.bf16.mxu0 0
    %297 = vmatpush2.bf16.xpose.msra.mxu0 0
    %298 = vmatprep.subr.bf16.mxu0 0
    %299 = vmatpush2.bf16.xpose.msra.mxu0 0
    %300 = vmatprep.mubr.bf16.mxu0 0
    %301 = vmatmul.mubr.bf16.gmra.mxu0 %v196
    %v302 = vpop.f32.mrf.mxu0
    %v303 = vadd.f32 %v218, %v302
    %v304 = vpop.f32.mrf.mxu0
    %v305 = vpop.f32.mrf.mxu0
    %v306 = vpop.f32.mrf.mxu0
    %307 = vdwg.mxu0
    %v308 = vsub.f32 0.0, %v303
    %v309 = vmul.f32 %v308, 1.442695
    %v310 = vpow.pop %v309
    %v311 = vadd.f32 %v310, 1.0
    %v312 = vrcp.pop %v311
    %v313 = vmul.f32 %v303, %v312
    %v314 = vpack.c.bf16 %v313, %v313
    %v315 = vld [vmem:[#allocation8] sm:$0xf]
    %v316 = vld [vmem:[#allocation8 + $0x4] sm:$0xf]
    %v317 = vld [vmem:[#allocation8 + $0x8] sm:$0xf]
    %v318 = vld [vmem:[#allocation8 + $0xc] sm:$0xf]
    %v319 = vld [vmem:[#allocation8 + $0x10] sm:$0xf]
    %v320 = vld [vmem:[#allocation8 + $0x14] sm:$0xf]
    %v321 = vld [vmem:[#allocation8 + $0x18] sm:$0xf]
    %v322 = vld [vmem:[#allocation8 + $0x1c] sm:$0xf]
    %v323 = vld [vmem:[#allocation8 + $0x20] sm:$0xf]
    %v324 = vld [vmem:[#allocation8 + $0x24] sm:$0xf]
    %v325 = vld [vmem:[#allocation8 + $0x28] sm:$0xf]
    %v326 = vld [vmem:[#allocation8 + $0x2c] sm:$0xf]
    %v327 = vld [vmem:[#allocation8 + $0x30] sm:$0xf]
    %v328 = vld [vmem:[#allocation8 + $0x34] sm:$0xf]
    %v329 = vld [vmem:[#allocation8 + $0x38] sm:$0xf]
    %v330 = vld [vmem:[#allocation8 + $0x3c] sm:$0xf]
    %v347 = vunpack.c.l.b16 %v315
    %v348 = vunpack.c.l.b16 %v316
    %v349 = vunpack.c.l.b16 %v317
    %v350 = vunpack.c.l.b16 %v318
    %v351 = vunpack.c.l.b16 %v319
    %v352 = vunpack.c.l.b16 %v320
    %v353 = vunpack.c.l.b16 %v321
    %v354 = vunpack.c.l.b16 %v322
    %v355 = vunpack.c.l.b16 %v323
    %v356 = vunpack.c.l.b16 %v324
    %v357 = vunpack.c.l.b16 %v325
    %v358 = vunpack.c.l.b16 %v326
    %v359 = vunpack.c.l.b16 %v327
    %v360 = vunpack.c.l.b16 %v328
    %v361 = vunpack.c.l.b16 %v329
    %v362 = vunpack.c.l.b16 %v330
    %v363 = vpack.c.b16 %v348, %v347
    %v364 = vpack.c.b16 %v350, %v349
    %v365 = vpack.c.b16 %v352, %v351
    %v366 = vpack.c.b16 %v354, %v353
    %v367 = vpack.c.b16 %v356, %v355
    %v368 = vpack.c.b16 %v358, %v357
    %v369 = vpack.c.b16 %v360, %v359
    %v370 = vpack.c.b16 %v362, %v361
    %379 = vmatprep.subr.bf16.mxu0 0
    %380 = vmatpush1.bf16.xpose.msra.mxu0 %v370
    %381 = vmatprep.subr.bf16.mxu0 0
    %382 = vmatpush1.bf16.xpose.msra.mxu0 %v369
    %383 = vmatprep.subr.bf16.mxu0 0
    %384 = vmatpush1.bf16.xpose.msra.mxu0 %v368
    %385 = vmatprep.subr.bf16.mxu0 0
    %386 = vmatpush1.bf16.xpose.msra.mxu0 %v367
    %387 = vmatprep.subr.bf16.mxu0 0
    %388 = vmatpush1.bf16.xpose.msra.mxu0 %v366
    %389 = vmatprep.subr.bf16.mxu0 0
    %390 = vmatpush1.bf16.xpose.msra.mxu0 %v365
    %391 = vmatprep.subr.bf16.mxu0 0
    %392 = vmatpush1.bf16.xpose.msra.mxu0 %v364
    %393 = vmatprep.subr.bf16.mxu0 0
    %394 = vmatpush1.bf16.xpose.msra.mxu0 %v363
    %395 = vmatprep.subr.bf16.mxu0 0
    %396 = vmatpush2.bf16.xpose.msra.mxu0 0
    %397 = vmatprep.subr.bf16.mxu0 0
    %398 = vmatpush2.bf16.xpose.msra.mxu0 0
    %399 = vmatprep.subr.bf16.mxu0 0
    %400 = vmatpush2.bf16.xpose.msra.mxu0 0
    %401 = vmatprep.subr.bf16.mxu0 0
    %402 = vmatpush2.bf16.xpose.msra.mxu0 0
    %403 = vmatprep.subr.bf16.mxu0 0
    %404 = vmatpush2.bf16.xpose.msra.mxu0 0
    %405 = vmatprep.subr.bf16.mxu0 0
    %406 = vmatpush2.bf16.xpose.msra.mxu0 0
    %407 = vmatprep.subr.bf16.mxu0 0
    %408 = vmatpush2.bf16.xpose.msra.mxu0 0
    %409 = vmatprep.subr.bf16.mxu0 0
    %410 = vmatpush2.bf16.xpose.msra.mxu0 0
    %411 = vmatprep.mubr.bf16.mxu0 0
    %412 = vmatmul.mubr.bf16.gmra.mxu0 %v314
    %v413 = vpop.f32.mrf.mxu0
    %v414 = vadd.f32 0.0, %v413
    %v415 = vpop.f32.mrf.mxu0
    %v416 = vpop.f32.mrf.mxu0
    %v417 = vpop.f32.mrf.mxu0
    %418 = vdwg.mxu0
    %419 = vst [vmem:[#allocation10] sm:$0xff] %v414
    // Predicated region
    $region42: #{tpu_custom_call.1} parent=1 // pred_check
      _
    $region43: #{tpu_custom_call.1} parent=1 // pred_check_branch
      %421 = sbr.rel (0) target = $region45
    $region44: #{tpu_custom_call.1} parent=1 // pred_region
      %s423 = ssub.s32 128, 128
      %424 = vsyncadd [#allocation4], %s423
      %s426 = sshll.u32 [#allocation10], 4
      %s427 = int_to_ptr.vmem [resolvable:$true] %s426
      %429 = dma.vmem_to_hbm [thread:$0]  %s427, 128, %s6, [#allocation4]
    $region45: #{tpu_custom_call.1} parent=1 // pred_fallthru
      _
    // Predicated region
    $region46: #{tpu_custom_call.1} parent=1 // pred_check
      _
    $region47: #{tpu_custom_call.1} parent=1 // pred_check_branch
      %431 = sbr.rel (0) target = $region49
    $region48: #{tpu_custom_call.1} parent=1 // pred_region
      %432 = dma.done [#allocation4], 128
    $region49: #{tpu_custom_call.1} parent=1 // pred_fallthru
      _
    %433 = vsyncpa [#allocation3], 1
    %434 = vsyncpa [#allocation6], 1
    %435 = vsyncpa [#allocation9], 1
    %436 = vsyncpa [#allocation4], 1

</llo_original>
